<compile_context>
chip_gen: v7x
topology: tpu7x:2x2x1
jax: 0.10.0
libtpu: 0.0.40
codegen_flags: <defaults>
</compile_context>

<pallas_src>
import functools

import numpy as np
import jax
import jax.numpy as jnp
from jax import lax
from jax.experimental import pallas as pl
from jax.experimental.pallas import tpu as pltpu

EPS = 1e-3  # every BatchNorm2d in these ops uses eps=0.001

PRIMITIVES = (
    'none', 'max_pool_3x3', 'avg_pool_3x3', 'skip_connect',
    'sep_conv_3x3', 'sep_conv_5x5', 'dil_conv_3x3', 'dil_conv_5x5',
)

_VMEM_SPEC = pl.BlockSpec(memory_space=pltpu.MemorySpace.VMEM)


# --------------------------- roll direction probe ---------------------------

_ROLL_SIGN = None  # (sign_for_axis0, sign_for_axis1); np.roll convention == +1


def _probe_roll_sign():
    """Determine pltpu.roll's rotation direction once with a tiny kernel."""
    x = jnp.arange(8 * 128, dtype=jnp.float32).reshape(8, 128)
    signs = []
    for axis in (0, 1):
        def k(x_ref, o_ref, axis=axis):
            o_ref[...] = pltpu.roll(x_ref[...], 1, axis=axis)
        out = np.asarray(pl.pallas_call(
            k, out_shape=jax.ShapeDtypeStruct((8, 128), jnp.float32),
            in_specs=[_VMEM_SPEC], out_specs=_VMEM_SPEC)(x))
        if np.array_equal(out, np.roll(np.asarray(x), 1, axis=axis)):
            signs.append(1)
        elif np.array_equal(out, np.roll(np.asarray(x), -1, axis=axis)):
            signs.append(-1)
        else:
            raise RuntimeError("unexpected pltpu.roll semantics")
    return tuple(signs)


def _ensure_roll_sign():
    global _ROLL_SIGN
    if _ROLL_SIGN is None:
        _ROLL_SIGN = _probe_roll_sign()


def _roll(x, shift, axis):
    """np.roll semantics (out[i] = x[(i - shift) % n]) via the XLU rotate."""
    n = x.shape[axis]
    shift = shift % n
    if shift == 0:
        return x
    return pltpu.roll(x, (_ROLL_SIGN[axis] * shift) % n, axis=axis)


# ------------------------------ layout helpers -------------------------------

def _pack_nchw(x):
    """NCHW -> (H, C*N*W) lane-packed slab, lane order (c, n, w)."""
    N, C, H, W = x.shape
    return jnp.transpose(x, (2, 1, 0, 3)).reshape(H, C * N * W)


def _unpack_nchw(y, N, C, H, W):
    return jnp.transpose(y.reshape(H, C, N, W), (2, 1, 0, 3))


# ----------------------------- Pallas kernels ------------------------------

def _dilconv_chain_kernel(x_ref, p_ref, wdw_ref, wpw_ref, o_ref,
                          *, H, L, NW, C, stages):
    """Fully fused chain of DilConv stages on the lane-packed slab (stride=1).

    x_ref   : VMEM (H, L)       activations, lane order (c, n, w), L = C*N*W
    p_ref   : VMEM (8*ns, L)    per-stage rows: s0,b0,s1,b1,a0,s2,b2,a1
    wdw_ref : VMEM (sum K^2, L) depthwise tap weights * column-validity mask
    wpw_ref : VMEM (ns*C, L)    pointwise weights per channel-roll delta
    o_ref   : VMEM (H, L)
    """
    row_idx = lax.broadcasted_iota(jnp.int32, (H, 1), 0)
    cur = x_ref[...].astype(jnp.float32)
    tap = 0
    for si, (K, dil, pad) in enumerate(stages):
        pr = 8 * si
        res = cur
        xb = cur * p_ref[pr + 0] + p_ref[pr + 1]                   # BN0
        acc = jnp.zeros((H, L), jnp.float32)
        for kh in range(K):
            dh = kh * dil - pad
            rs = _roll(xb, -dh, 0)                                 # row tap
            if dh != 0:  # conv zero padding on rows
                rs = jnp.where((row_idx + dh >= 0) & (row_idx + dh < H),
                               rs, 0.0)
            for kw in range(K):
                dw = kw * dil - pad
                cs = _roll(rs, -dw, 1)                             # col tap
                # column zero padding is folded into the weight row
                acc = acc + cs * wdw_ref[tap]
                tap += 1
        t = acc * p_ref[pr + 2] + p_ref[pr + 3]                    # BN1
        y = jnp.where(t >= 0.0, t, p_ref[pr + 4] * t)              # PReLU
        # 1x1 pointwise: circular channel rolls (exact, multiples of N*W)
        z = y * wpw_ref[si * C + 0]
        for d in range(1, C):
            z = z + _roll(y, -d * NW, 1) * wpw_ref[si * C + d]
        t = z * p_ref[pr + 5] + p_ref[pr + 6] + res                # BN2 + res
        cur = jnp.where(t >= 0.0, t, p_ref[pr + 7] * t)            # PReLU
    o_ref[...] = cur.astype(o_ref.dtype)


def _pool_bn_kernel(x_ref, scale_ref, shift_ref, o_ref,
                    *, H, W, L, K, pad, is_max):
    """[Max|Avg]Pool(3,1,1) -> BN -> BN fused on the lane-packed slab.

    x_ref     : VMEM (H, L)
    scale_ref : VMEM (H, L)  composed BN scale (avg: * count_include_pad=False
                             divisor, folded host-side)
    shift_ref : VMEM (1, L)  composed BN shift
    """
    x = x_ref[...].astype(jnp.float32)
    row_idx = lax.broadcasted_iota(jnp.int32, (H, 1), 0)
    col_w = lax.broadcasted_iota(jnp.int32, (1, L), 1) % W
    fill = jnp.float32(-1e30) if is_max else jnp.float32(0.0)
    acc = jnp.full((H, L), -1e30 if is_max else 0.0, jnp.float32)
    for kh in range(K):
        dh = kh - pad
        rs = _roll(x, -dh, 0)
        if dh != 0:
            rs = jnp.where((row_idx + dh >= 0) & (row_idx + dh < H), rs, fill)
        for kw in range(K):
            dw = kw - pad
            cs = _roll(rs, -dw, 1)
            if dw != 0:
                cs = jnp.where((col_w + dw >= 0) & (col_w + dw < W), cs, fill)
            acc = jnp.maximum(acc, cs) if is_max else acc + cs
    o_ref[...] = (acc * scale_ref[...] + shift_ref[0]).astype(o_ref.dtype)


# ----------------------------- Pallas wrappers ------------------------------

def dilconv_chain(x_nchw, stage_params, stage_cfgs, eps=EPS):
    """Run a chain of DilConv stages (stride=1) as one fused pallas_call.

    stage_cfgs: list of (K, dilation, padding) per stage.
    """
    _ensure_roll_sign()
    N, C, H, W = x_nchw.shape
    NW, L = N * W, C * N * W
    c_lane = np.arange(L) // NW           # channel of each lane
    w_lane = np.arange(L) % W             # within-image column of each lane

    p_rows, wdw_rows, wpw_rows = [], [], []
    for p, (K, dil, pad) in zip(stage_params, stage_cfgs):
        s0 = 1.0 / jnp.sqrt(p['bn0_var'] + eps); b0 = -p['bn0_mean'] * s0
        s1 = 1.0 / jnp.sqrt(p['bn1_var'] + eps); b1 = -p['bn1_mean'] * s1
        s2 = 1.0 / jnp.sqrt(p['bn2_var'] + eps); b2 = -p['bn2_mean'] * s2
        for v in (s0, b0, s1, b1, p['alpha0'], s2, b2, p['alpha1']):
            p_rows.append(v[c_lane])                         # lane-broadcast
        # depthwise: one lane row per tap, column zero-padding folded in
        for kh in range(K):
            for kw in range(K):
                dw = kw * dil - pad
                colvalid = ((w_lane + dw >= 0) &
                            (w_lane + dw < W)).astype(np.float32)
                wdw_rows.append(p['w_dw'][kh, kw][c_lane] * colvalid)
        # pointwise: one lane row per channel-roll delta d
        co = np.arange(C)
        for d in range(C):
            wpw_rows.append(p['w_pw'][(co + d) % C, co][c_lane])

    p_packed = jnp.stack(p_rows).astype(jnp.float32)         # (8*ns, L)
    wdw = jnp.stack(wdw_rows).astype(jnp.float32)            # (sum K^2, L)
    wpw = jnp.stack(wpw_rows).astype(jnp.float32)            # (ns*C, L)
    x_p = _pack_nchw(x_nchw.astype(jnp.float32))             # (H, L)

    kern = functools.partial(_dilconv_chain_kernel, H=H, L=L, NW=NW, C=C,
                             stages=tuple(stage_cfgs))
    y_p = pl.pallas_call(
        kern,
        out_shape=jax.ShapeDtypeStruct((H, L), jnp.float32),
        in_specs=[_VMEM_SPEC] * 4,
        out_specs=_VMEM_SPEC,
    )(x_p, p_packed, wdw, wpw)
    return _unpack_nchw(y_p, N, C, H, W)


def pool_bn_fused(x_nchw, mode, p, *, K=3, pad=1, eps=EPS):
    """[Max|Avg]Pool(3,1,1) -> BN -> BN (both affine=False), fused."""
    _ensure_roll_sign()
    N, C, H, W = x_nchw.shape
    NW, L = N * W, C * N * W
    c_lane = np.arange(L) // NW
    w_lane = np.arange(L) % W
    is_max = (mode == 'max')

    # compose the two affine-free BNs into one per-channel scale/shift
    s1 = 1.0 / jnp.sqrt(p['bn1_var'] + eps)
    s2 = 1.0 / jnp.sqrt(p['bn2_var'] + eps)
    s = s1 * s2
    b = (-p['bn1_mean'] * s1 - p['bn2_mean']) * s2
    s_row = s[c_lane]                                        # (L,)
    b_row = b[c_lane][None, :]                               # (1, L)
    if is_max:
        scale = jnp.tile(s_row[None, :], (H, 1))
    else:
        # count_include_pad=False divisor folded into the BN scale (static)
        r0 = np.arange(H) - pad
        c0 = np.arange(W) - pad
        rcnt = np.minimum(r0 + K - 1, H - 1) - np.maximum(r0, 0) + 1
        ccnt = np.minimum(c0 + K - 1, W - 1) - np.maximum(c0, 0) + 1
        inv_cnt = 1.0 / (rcnt[:, None] * ccnt[None, :]).astype(np.float32)
        scale = jnp.asarray(inv_cnt[:, w_lane]) * s_row[None, :]   # (H, L)

    x_p = _pack_nchw(x_nchw.astype(jnp.float32))
    kern = functools.partial(_pool_bn_kernel, H=H, W=W, L=L, K=K, pad=pad,
                             is_max=is_max)
    y_p = pl.pallas_call(
        kern,
        out_shape=jax.ShapeDtypeStruct((H, L), jnp.float32),
        in_specs=[_VMEM_SPEC] * 3,
        out_specs=_VMEM_SPEC,
    )(x_p, scale.astype(jnp.float32), b_row.astype(jnp.float32))
    return _unpack_nchw(y_p, N, C, H, W)


# ----------------------------- op dispatch ----------------------------------

def select_op_pc_forward(params, x_nchw, weights, *, stride=1):
    """SelectOp_PC.forward(x, weights) with weights an op index.
    xtemp == x, xtemp2 is empty and channel_shuffle(., 1) is identity, so the
    result is exactly ops[weights](x)."""
    prim = PRIMITIVES[int(weights)]
    x = x_nchw.astype(jnp.float32)
    if prim == 'none':
        return jnp.zeros_like(x if stride == 1 else x[:, :, ::stride, ::stride])
    if prim == 'skip_connect':
        # TODO(synk): FactorizedReduce (stride=2 skip_connect) not implemented.
        assert stride == 1
        return x
    # TODO(synk): stride>1 strided conv/pool paths not implemented.
    assert stride == 1
    if prim in ('max_pool_3x3', 'avg_pool_3x3'):
        return pool_bn_fused(x, 'max' if prim.startswith('max') else 'avg',
                             params[prim])
    if prim == 'sep_conv_3x3':
        p1, p2 = params[prim]
        return dilconv_chain(x, [p1, p2], [(3, 1, 1), (3, 1, 1)])
    if prim == 'sep_conv_5x5':
        p1, p2 = params[prim]
        return dilconv_chain(x, [p1, p2], [(5, 1, 2), (5, 1, 2)])
    if prim == 'dil_conv_3x3':
        return dilconv_chain(x, [params[prim]], [(3, 2, 2)])
    if prim == 'dil_conv_5x5':
        return dilconv_chain(x, [params[prim]], [(5, 2, 4)])
    raise ValueError(prim)


# --------------------------- parameter initialization ------------------------

def _init_bn(key, C):
    k1, k2 = jax.random.split(key)
    mean = jax.random.normal(k1, (C,), jnp.float32) * 0.1
    var = jax.random.uniform(k2, (C,), jnp.float32, minval=0.5, maxval=1.5)
    return mean, var


def _init_dilconv(key, C, K):
    keys = jax.random.split(key, 5)
    p = {}
    p['bn0_mean'], p['bn0_var'] = _init_bn(keys[0], C)
    p['w_dw'] = jax.random.normal(keys[1], (K, K, C), jnp.float32) * 0.2   # depthwise (K,K,C)
    p['bn1_mean'], p['bn1_var'] = _init_bn(keys[2], C)
    p['alpha0'] = jnp.full((C,), 0.25, jnp.float32)                        # PReLU default
    p['w_pw'] = jax.random.normal(keys[3], (C, C), jnp.float32) * 0.2      # pointwise (Cin,Cout)
    p['bn2_mean'], p['bn2_var'] = _init_bn(keys[4], C)
    p['alpha1'] = jnp.full((C,), 0.25, jnp.float32)
    return p


def init_select_op_pc(key, C):
    params = {}
    keys = jax.random.split(key, len(PRIMITIVES))
    for i, prim in enumerate(PRIMITIVES):
        k = keys[i]
        if prim in ('max_pool_3x3', 'avg_pool_3x3'):
            k1, k2 = jax.random.split(k)
            m1, v1 = _init_bn(k1, C)
            m2, v2 = _init_bn(k2, C)
            params[prim] = dict(bn1_mean=m1, bn1_var=v1, bn2_mean=m2, bn2_var=v2)
        elif prim in ('sep_conv_3x3', 'sep_conv_5x5'):
            K = 3 if prim.endswith('3x3') else 5
            k1, k2 = jax.random.split(k)
            params[prim] = (_init_dilconv(k1, C, K), _init_dilconv(k2, C, K))
        elif prim in ('dil_conv_3x3', 'dil_conv_5x5'):
            K = 3 if prim.endswith('3x3') else 5
            params[prim] = _init_dilconv(k, C, K)
        else:
            params[prim] = None
    return params


# ------------------------------ pure-JAX reference ---------------------------

def _ref_bn(x, m, v, eps=EPS):
    return (x - m[None, :, None, None]) / jnp.sqrt(v + eps)[None, :, None, None]


def _ref_prelu(x, a):
    return jnp.where(x >= 0, x, a[None, :, None, None] * x)


def _ref_dilconv(x, p, *, K, stride, pad, dil, eps=EPS):
    res = x
    C = x.shape[1]
    y = _ref_bn(x, p['bn0_mean'], p['bn0_var'], eps)
    w_dw = jnp.transpose(p['w_dw'], (2, 0, 1))[:, None, :, :]        # (C,1,K,K)
    y = lax.conv_general_dilated(y, w_dw, (stride, stride), [(pad, pad), (pad, pad)],
                                 rhs_dilation=(dil, dil), feature_group_count=C,
                                 dimension_numbers=('NCHW', 'OIHW', 'NCHW'))
    y = _ref_prelu(_ref_bn(y, p['bn1_mean'], p['bn1_var'], eps), p['alpha0'])
    w_pw = jnp.transpose(p['w_pw'], (1, 0))[:, :, None, None]        # (Cout,Cin,1,1)
    y = lax.conv_general_dilated(y, w_pw, (1, 1), [(0, 0), (0, 0)],
                                 dimension_numbers=('NCHW', 'OIHW', 'NCHW'))
    y = _ref_bn(y, p['bn2_mean'], p['bn2_var'], eps)
    if stride == 1:
        y = res + y
    return _ref_prelu(y, p['alpha1'])


def _ref_pool_bn(x, mode, p, *, stride=1, eps=EPS):
    N, C, H, W = x.shape
    K, pad = 3, 1
    if mode == 'max':
        xp = jnp.pad(x, ((0, 0), (0, 0), (pad, pad), (pad, pad)),
                     constant_values=jnp.finfo(jnp.float32).min)
        out = lax.reduce_window(xp, -jnp.inf, lax.max, (1, 1, K, K),
                                (1, 1, stride, stride), 'VALID')
    else:
        xp = jnp.pad(x, ((0, 0), (0, 0), (pad, pad), (pad, pad)))
        summ = lax.reduce_window(xp, 0.0, lax.add, (1, 1, K, K),
                                 (1, 1, stride, stride), 'VALID')
        ones = jnp.pad(jnp.ones((1, 1, H, W), jnp.float32),
                       ((0, 0), (0, 0), (pad, pad), (pad, pad)))
        cnt = lax.reduce_window(ones, 0.0, lax.add, (1, 1, K, K),
                                (1, 1, stride, stride), 'VALID')
        out = summ / cnt
    out = _ref_bn(out, p['bn1_mean'], p['bn1_var'], eps)
    out = _ref_bn(out, p['bn2_mean'], p['bn2_var'], eps)
    return out


def ref_forward(params, x_nchw, weights, *, stride=1):
    prim = PRIMITIVES[int(weights)]
    x = x_nchw.astype(jnp.float32)
    if prim == 'none':
        return x * 0.0
    if prim == 'skip_connect':
        return x
    if prim in ('max_pool_3x3', 'avg_pool_3x3'):
        return _ref_pool_bn(x, 'max' if prim.startswith('max') else 'avg',
                            params[prim], stride=stride)
    if prim == 'sep_conv_3x3':
        p1, p2 = params[prim]
        y = _ref_dilconv(x, p1, K=3, stride=stride, pad=1, dil=1)
        return _ref_dilconv(y, p2, K=3, stride=1, pad=1, dil=1)
    if prim == 'sep_conv_5x5':
        p1, p2 = params[prim]
        y = _ref_dilconv(x, p1, K=5, stride=stride, pad=2, dil=1)
        return _ref_dilconv(y, p2, K=5, stride=1, pad=2, dil=1)
    if prim == 'dil_conv_3x3':
        return _ref_dilconv(x, params[prim], K=3, stride=stride, pad=2, dil=2)
    if prim == 'dil_conv_5x5':
        return _ref_dilconv(x, params[prim], K=5, stride=stride, pad=4, dil=2)
    raise ValueError(prim)


# ------------------------------------ main -----------------------------------

if __name__ == "__main__":
    key = jax.random.PRNGKey(0)
    kx, kp = jax.random.split(key)
    N, C, H, W = 2, 4, 16, 16
    stride = 1
    x = jax.random.normal(kx, (N, C, H, W), jnp.float32)
    params = init_select_op_pc(kp, C)

    for idx, prim in enumerate(PRIMITIVES):
        out = select_op_pc_forward(params, x, idx, stride=stride)
        out = jax.block_until_ready(out)
        ref = jax.block_until_ready(ref_forward(params, x, idx, stride=stride))
        np.testing.assert_allclose(np.asarray(out), np.asarray(ref),
                                   rtol=1e-4, atol=1e-4,
                                   err_msg=f"mismatch for primitive {prim}")
        assert out.shape == (N, C, H, W), (prim, out.shape)

    print("KERNEL_OK")
</pallas_src>

<mosaic_0001>
module attributes {stable_mosaic.version = 11 : i64} {
  func.func @k(%arg0: memref<8x128xf32, #tpu.memory_space<vmem>>, %arg1: memref<8x128xf32, #tpu.memory_space<vmem>>) attributes {dimension_semantics = [], scalar_prefetch = 0 : i64, scratch_operands = 0 : i64, tpu.core_type = #tpu.core_type<tc>} {
    %c0 = arith.constant 0 : index
    %c0_0 = arith.constant 0 : index
    %0 = vector.load %arg0[%c0, %c0_0] : memref<8x128xf32, #tpu.memory_space<vmem>>, vector<8x128xf32>
    %c1_i32 = arith.constant 1 : i32
    %1 = tpu.dynamic_rotate %0 by %c1_i32 dim 0 : vector<8x128xf32>, i32 -> vector<8x128xf32>
    %c0_1 = arith.constant 0 : index
    %c0_2 = arith.constant 0 : index
    %2 = vector.load %arg1[%c0_1, %c0_2] : memref<8x128xf32, #tpu.memory_space<vmem>>, vector<8x128xf32>
    tpu.vector_store %arg1[%c0_1, %c0_2], %1 {strides = array<i32>} : memref<8x128xf32, #tpu.memory_space<vmem>>, vector<8x128xf32>,
    return
  }
}

</mosaic_0001>

<llo_original>
// kernel: tpu_custom_call.1
$region0: #{tpu_custom_call.1}
  #allocation0 [shape = 'u32[]', space=smem, size = 0x4, offset = 0x4, fixed_abs, tag = 'smem constant byte address 0x4 - core index']
  #allocation1 [shape = 'u32[144,128]{1,0:T(1,128)}', space=vmem, size = 0x12000, scoped, tag = 'internal scratch']
  %s0 = inlined_call_operand.hbm [shape: f32[8,128], index: 0, kind: input, shape index: {}]
  %s1 = inlined_call_operand.hbm [shape: f32[8,128], index: 1, kind: output, shape index: {}]
  %s2 = sld [smem:[#allocation0]]
  $region18: #{tpu_custom_call.1} parent=0
    _
  %s4 = ssub.s32 1, %s2
  %s5 = scalar_select 0, %s4, %s2
  $region1: #{tpu_custom_call.1} parent=0
    #allocation2 [shape = 'u8[4096]{0}', space=vmem, size = 0x1000, scoped, tag = 'input window, operand 0, single buffered']
    #allocation3 [shape = 's32[1]{0}', space=sflag, size = 0x4, scoped, tag = 'scoped memory for tpu_custom_call.1']
    #allocation4 [shape = 's32[1]{0}', space=sflag, size = 0x4, scoped, tag = 'scoped memory for tpu_custom_call.1']
    #allocation5 [shape = 'u8[4096]{0}', space=vmem, size = 0x1000, scoped, tag = 'output window, operand 0, single buffered']
    %6 = vsyncpa [#allocation3], 0
    %7 = vsyncpa [#allocation4], 0
    // Predicated region
    $region2: #{tpu_custom_call.1} parent=1 // pred_check
      _
    $region3: #{tpu_custom_call.1} parent=1 // pred_check_branch
      %9 = sbr.rel (0) target = $region5
    $region4: #{tpu_custom_call.1} parent=1 // pred_region
      %s11 = ssub.s32 128, 128
      %12 = vsyncadd [#allocation3], %s11
      %s14 = sshll.u32 [#allocation2], 4
      %s15 = int_to_ptr.vmem [resolvable:$true] %s14
      %17 = dma.hbm_to_vmem [thread:$0]  %s0, 128, %s15, [#allocation3]
    $region5: #{tpu_custom_call.1} parent=1 // pred_fallthru
      _
    // Predicated region
    $region6: #{tpu_custom_call.1} parent=1 // pred_check
      _
    $region7: #{tpu_custom_call.1} parent=1 // pred_check_branch
      %19 = sbr.rel (0) target = $region9
    $region8: #{tpu_custom_call.1} parent=1 // pred_region
      %20 = dma.done [#allocation3], 128
    $region9: #{tpu_custom_call.1} parent=1 // pred_fallthru
      _
    %v21 = vld [vmem:[#allocation2] sm:$0xff]
    %v22 = vrot.slane %v21, 7
    %23 = vst [vmem:[#allocation5] sm:$0xff] %v22
    // Predicated region
    $region10: #{tpu_custom_call.1} parent=1 // pred_check
      _
    $region11: #{tpu_custom_call.1} parent=1 // pred_check_branch
      %25 = sbr.rel (0) target = $region13
    $region12: #{tpu_custom_call.1} parent=1 // pred_region
      %s27 = ssub.s32 128, 128
      %28 = vsyncadd [#allocation4], %s27
      %s30 = sshll.u32 [#allocation5], 4
      %s31 = int_to_ptr.vmem [resolvable:$true] %s30
      %33 = dma.vmem_to_hbm [thread:$0]  %s31, 128, %s1, [#allocation4]
    $region13: #{tpu_custom_call.1} parent=1 // pred_fallthru
      _
    // Predicated region
    $region14: #{tpu_custom_call.1} parent=1 // pred_check
      _
    $region15: #{tpu_custom_call.1} parent=1 // pred_check_branch
      %35 = sbr.rel (0) target = $region17
    $region16: #{tpu_custom_call.1} parent=1 // pred_region
      %36 = dma.done [#allocation4], 128
    $region17: #{tpu_custom_call.1} parent=1 // pred_fallthru
      _
    %37 = vsyncpa [#allocation3], 1
    %38 = vsyncpa [#allocation4], 1

</llo_original>
